<compile_context>
chip_gen: v7x
topology: tpu7x:2x2x1
jax: 0.10.0
libtpu: 0.0.40
codegen_flags: <defaults>
</compile_context>

<pallas_src>
import jax
import jax.numpy as jnp
from jax.experimental import pallas as pl
from jax.experimental.pallas import tpu as pltpu


def reward_head_kernel(x_ref, mask_ref, w1_ref, b1_ref, w2_ref, b2_ref, o_ref):
    """Reward head: relu((x * mask) @ W1 + b1) . w2 + b2.

    x_ref   : [TM, D]  bf16 hidden-state tile
    mask_ref: [TM, 1]  bf16 attention mask tile (stand-in backbone masking)
    w1_ref  : [D, H]   bf16 first linear weight (in x out)
    b1_ref  : [1, H]   f32  first linear bias
    w2_ref  : [1, H]   f32  second linear weight, stored as a row
    b2_ref  : [1, 1]   f32  second linear bias (SMEM scalar)
    o_ref   : [TM, 1]  f32  per-token reward
    """
    x = x_ref[...] * mask_ref[...]                       # VPU, fused mask
    h = jnp.dot(x, w1_ref[...], preferred_element_type=jnp.float32)  # MXU
    h = jnp.maximum(h + b1_ref[...], 0.0)                # bias + ReLU (VPU)
    # [TM, H] @ [H, 1] is <1% MXU utilization -> do it on the VPU/XLU instead.
    r = jnp.sum(h * w2_ref[...], axis=-1, keepdims=True)
    o_ref[...] = r + b2_ref[0, 0]


def reward_head_pallas(hidden, mask, w1, b1, w2, b2, *, tm=512):
    """hidden: [B, S, D] f32, mask: [B, S] -> rewards [B, S] f32."""
    B, S, D = hidden.shape
    H = w1.shape[1]
    M = B * S

    # Tile the token dimension.  Block shapes must have the second-to-last dim
    # divisible by 8 (or equal to the full extent); fall back to one block for
    # awkward tiny shapes.
    tm = min(tm, M)
    if tm != M and tm % 8 != 0:
        tm = M
    grid = (pl.cdiv(M, tm),)

    x2d = hidden.reshape(M, D).astype(jnp.bfloat16)
    m2d = mask.reshape(M, 1).astype(jnp.bfloat16)
    w1_bf = w1.astype(jnp.bfloat16)
    b1_2d = b1.reshape(1, H).astype(jnp.float32)
    w2_row = w2.reshape(1, H).astype(jnp.float32)        # (H,1) -> (1,H), same order
    b2_2d = b2.reshape(1, 1).astype(jnp.float32)

    out = pl.pallas_call(
        reward_head_kernel,
        out_shape=jax.ShapeDtypeStruct((M, 1), jnp.float32),
        grid=grid,
        in_specs=[
            pl.BlockSpec((tm, D), lambda i: (i, 0)),     # x: streamed over M
            pl.BlockSpec((tm, 1), lambda i: (i, 0)),     # mask: streamed over M
            pl.BlockSpec((D, H), lambda i: (0, 0)),      # W1: resident
            pl.BlockSpec((1, H), lambda i: (0, 0)),      # b1: resident
            pl.BlockSpec((1, H), lambda i: (0, 0)),      # w2 row: resident
            pl.BlockSpec(memory_space=pltpu.MemorySpace.SMEM),  # b2: SMEM scalar
        ],
        out_specs=pl.BlockSpec((tm, 1), lambda i: (i, 0)),
        compiler_params=pltpu.CompilerParams(
            dimension_semantics=("parallel",),
            vmem_limit_bytes=48 * 1024 * 1024,
        ),
    )(x2d, m2d, w1_bf, b1_2d, w2_row, b2_2d)

    # Rearrange('... 1 -> ...')
    return out.reshape(B, S)


def _backbone_stub(output_sequence, params):
    # TODO(synk): the pretrained GPT2/BART/Longformer backbone is replaced by a
    # deterministic embedding-lookup stand-in (no full transformer in-kernel).
    emb = params["embedding"]                            # [V, D]
    return jnp.take(emb, output_sequence, axis=0)        # [B, S, D]


def reward_model_forward(output_sequence, output_sequence_mask, params, *, tm=512):
    """Full RewardModel.forward.

    output_sequence:      [B, S] int32 token ids
    output_sequence_mask: [B, S] int/float attention mask
    returns rewards:      [B, S] float32
    """
    hidden = _backbone_stub(output_sequence, params)     # [B, S, D]
    return reward_head_pallas(
        hidden, output_sequence_mask.astype(jnp.float32),
        params["w1"], params["b1"], params["w2"], params["b2"], tm=tm,
    )


def get_reward(output_sequence, output_sequence_mask, params):
    """rewards[:, -1] — only runs the head on the last token of each sequence."""
    hidden = _backbone_stub(output_sequence, params)     # [B, S, D]
    last_hidden = hidden[:, -1:, :]                      # [B, 1, D]
    last_mask = output_sequence_mask[:, -1:].astype(jnp.float32)
    r = reward_head_pallas(
        last_hidden, last_mask,
        params["w1"], params["b1"], params["w2"], params["b2"],
    )                                                    # [B, 1]
    return r[:, 0]


if __name__ == "__main__":
    # Small, deterministic synthetic setup.
    B, S = 2, 8          # batch, sequence
    D = 32               # backbone hidden size (n_embd stand-in)
    H = 64               # config.model_head_hidden_size
    V = 128              # vocab size for the stand-in embedding

    key = jax.random.PRNGKey(0)
    k_emb, k_w1, k_b1, k_w2, k_b2, k_tok = jax.random.split(key, 6)

    params = {
        "embedding": jax.random.normal(k_emb, (V, D), jnp.float32) * 0.02,
        "w1": jax.random.normal(k_w1, (D, H), jnp.float32) * 0.1,
        "b1": jax.random.normal(k_b1, (H,), jnp.float32) * 0.01,
        "w2": jax.random.normal(k_w2, (H, 1), jnp.float32) * 0.1,
        "b2": jax.random.normal(k_b2, (1,), jnp.float32) * 0.01,
    }

    output_sequence = jax.random.randint(k_tok, (B, S), 0, V, dtype=jnp.int32)
    output_sequence_mask = jnp.ones((B, S), dtype=jnp.int32)

    # Use tm=8 on the tiny demo shapes so the grid actually has 2 steps.
    rewards = reward_model_forward(output_sequence, output_sequence_mask, params, tm=8)
    rewards = jax.block_until_ready(rewards)

    # Pure-JAX reference (f32) — bf16 input quantization => loose tolerance.
    hidden = jnp.take(params["embedding"], output_sequence, axis=0)
    hidden = hidden * output_sequence_mask[..., None].astype(hidden.dtype)
    ref = jnp.maximum(hidden @ params["w1"] + params["b1"], 0.0) @ params["w2"] + params["b2"]
    ref = ref[..., 0]
    assert rewards.shape == (B, S)
    assert jnp.allclose(rewards, ref, atol=1e-2, rtol=1e-2), "mismatch vs JAX reference"

    last_reward = jax.block_until_ready(
        get_reward(output_sequence, output_sequence_mask, params)
    )
    assert last_reward.shape == (B,)
    assert jnp.allclose(last_reward, ref[:, -1], atol=1e-2, rtol=1e-2), \
        "get_reward mismatch vs JAX reference"

    print("KERNEL_OK")
</pallas_src>

<mosaic_0001>
module attributes {stable_mosaic.version = 11 : i64} {
  func.func @reward_head_kernel(%arg0: i32, %arg1: memref<8x32xbf16, #tpu.memory_space<vmem>>, %arg2: memref<8x1xbf16, #tpu.memory_space<vmem>>, %arg3: memref<32x64xbf16, #tpu.memory_space<vmem>>, %arg4: memref<1x64xf32, #tpu.memory_space<vmem>>, %arg5: memref<1x64xf32, #tpu.memory_space<vmem>>, %arg6: memref<1x1xf32, #tpu.memory_space<smem>>, %arg7: memref<8x1xf32, #tpu.memory_space<vmem>>) attributes {dimension_semantics = [#tpu.dimension_semantics<parallel>], iteration_bounds = array<i64: 2>, scalar_prefetch = 0 : i64, scratch_operands = 0 : i64, tpu.core_type = #tpu.core_type<tc>, window_params = [{transform_indices = @transform_0, window_bounds = array<i64: 8, 32>}, {transform_indices = @transform_1, window_bounds = array<i64: 8, 1>}, {pipeline_mode = #tpu.pipeline_mode<synchronous>, transform_indices = @transform_2, window_bounds = array<i64: 32, 64>}, {pipeline_mode = #tpu.pipeline_mode<synchronous>, transform_indices = @transform_3, window_bounds = array<i64: 1, 64>}, {pipeline_mode = #tpu.pipeline_mode<synchronous>, transform_indices = @transform_4, window_bounds = array<i64: 1, 64>}, {transform_indices = @transform_5, window_bounds = array<i64: 1, 1>}, {transform_indices = @transform_6, window_bounds = array<i64: 8, 1>}]} {
    %c0 = arith.constant 0 : index
    %c0_0 = arith.constant 0 : index
    %0 = vector.load %arg1[%c0, %c0_0] : memref<8x32xbf16, #tpu.memory_space<vmem>>, vector<8x32xbf16>
    %c0_1 = arith.constant 0 : index
    %c0_2 = arith.constant 0 : index
    %1 = vector.load %arg2[%c0_1, %c0_2] : memref<8x1xbf16, #tpu.memory_space<vmem>>, vector<8x1xbf16>
    %2 = vector.broadcast %1 : vector<8x1xbf16> to vector<8x32xbf16>
    %3 = arith.mulf %0, %2 : vector<8x32xbf16>
    %c0_3 = arith.constant 0 : index
    %c0_4 = arith.constant 0 : index
    %4 = vector.load %arg3[%c0_3, %c0_4] : memref<32x64xbf16, #tpu.memory_space<vmem>>, vector<32x64xbf16>
    %cst = arith.constant dense<0.000000e+00> : vector<8x64xf32>
    %5 = tpu.matmul %3, %4, %cst {dimension_numbers = #tpu.dot_dimension_numbers<[1], [0], [0], [1], [0, 0, 1, 1], [], []>} : vector<8x32xbf16>, vector<32x64xbf16>, vector<8x64xf32> -> vector<8x64xf32>
    %c0_5 = arith.constant 0 : index
    %c0_6 = arith.constant 0 : index
    %6 = vector.load %arg4[%c0_5, %c0_6] : memref<1x64xf32, #tpu.memory_space<vmem>>, vector<1x64xf32>
    %7 = vector.broadcast %6 : vector<1x64xf32> to vector<8x64xf32>
    %8 = arith.addf %5, %7 : vector<8x64xf32>
    %cst_7 = arith.constant 0.000000e+00 : f32
    %9 = vector.broadcast %cst_7 : f32 to vector<8x64xf32>
    %10 = arith.maximumf %8, %9 : vector<8x64xf32>
    %c0_8 = arith.constant 0 : index
    %c0_9 = arith.constant 0 : index
    %11 = vector.load %arg5[%c0_8, %c0_9] : memref<1x64xf32, #tpu.memory_space<vmem>>, vector<1x64xf32>
    %12 = vector.broadcast %11 : vector<1x64xf32> to vector<8x64xf32>
    %13 = arith.mulf %10, %12 : vector<8x64xf32>
    %cst_10 = arith.constant dense<0.000000e+00> : vector<8xf32>
    %14 = vector.multi_reduction <add>, %13, %cst_10 [1] : vector<8x64xf32> to vector<8xf32>
    %15 = vector.shape_cast %14 : vector<8xf32> to vector<8x1xf32>
    %c0_11 = arith.constant 0 : index
    %c0_12 = arith.constant 0 : index
    %16 = memref.load %arg6[%c0_11, %c0_12] : memref<1x1xf32, #tpu.memory_space<smem>>
    %17 = vector.broadcast %16 : f32 to vector<8x1xf32>
    %18 = arith.addf %15, %17 : vector<8x1xf32>
    %c0_13 = arith.constant 0 : index
    %c0_14 = arith.constant 0 : index
    %19 = vector.load %arg7[%c0_13, %c0_14] : memref<8x1xf32, #tpu.memory_space<vmem>>, vector<8x1xf32>
    tpu.vector_store %arg7[%c0_13, %c0_14], %18 {strides = array<i32>} : memref<8x1xf32, #tpu.memory_space<vmem>>, vector<8x1xf32>,
    return
  }
  func.func @transform_0(%arg0: i32) -> (i32, i32) {
    %c0_i32 = arith.constant 0 : i32
    %c0_i32_0 = arith.constant 0 : i32
    return %arg0, %c0_i32 : i32, i32
  }
  func.func @transform_1(%arg0: i32) -> (i32, i32) {
    %c0_i32 = arith.constant 0 : i32
    %c0_i32_0 = arith.constant 0 : i32
    return %arg0, %c0_i32 : i32, i32
  }
  func.func @transform_2(%arg0: i32) -> (i32, i32) {
    %c0_i32 = arith.constant 0 : i32
    %c0_i32_0 = arith.constant 0 : i32
    %c0_i32_1 = arith.constant 0 : i32
    return %c0_i32, %c0_i32_0 : i32, i32
  }
  func.func @transform_3(%arg0: i32) -> (i32, i32) {
    %c0_i32 = arith.constant 0 : i32
    %c0_i32_0 = arith.constant 0 : i32
    %c0_i32_1 = arith.constant 0 : i32
    return %c0_i32, %c0_i32_0 : i32, i32
  }
  func.func @transform_4(%arg0: i32) -> (i32, i32) {
    %c0_i32 = arith.constant 0 : i32
    %c0_i32_0 = arith.constant 0 : i32
    %c0_i32_1 = arith.constant 0 : i32
    return %c0_i32, %c0_i32_0 : i32, i32
  }
  func.func @transform_5(%arg0: i32) -> (i32, i32) {
    %c0_i32 = arith.constant 0 : i32
    %c0_i32_0 = arith.constant 0 : i32
    %c0_i32_1 = arith.constant 0 : i32
    return %c0_i32, %c0_i32_0 : i32, i32
  }
  func.func @transform_6(%arg0: i32) -> (i32, i32) {
    %c0_i32 = arith.constant 0 : i32
    %c0_i32_0 = arith.constant 0 : i32
    return %arg0, %c0_i32 : i32, i32
  }
}

</mosaic_0001>

<llo_original>
// kernel: tpu_custom_call.1
$region0: #{tpu_custom_call.1}
  #allocation0 [shape = 'u32[]', space=smem, size = 0x4, offset = 0x4, fixed_abs, tag = 'smem constant byte address 0x4 - core index']
  #allocation1 [shape = 'u32[144,128]{1,0:T(1,128)}', space=vmem, size = 0x12000, scoped, tag = 'internal scratch']
  #allocation2 [shape = 'f32[1,1]{1,0:T(1,128)S(6)}', space=smem, size = 0x200, scoped, tag = 'scoped memory for tpu_custom_call.1']
  %s0 = inlined_call_operand.hbm [shape: bf16[16,32], index: 0, kind: input, shape index: {}]
  %s1 = inlined_call_operand.vmem [shape: bf16[16,1], index: 1, kind: input, shape index: {}]
  %s2 = inlined_call_operand.vmem [shape: bf16[32,64], index: 2, kind: input, shape index: {}]
  %s3 = inlined_call_operand.vmem [shape: f32[1,64], index: 3, kind: input, shape index: {}]
  %s4 = inlined_call_operand.vmem [shape: f32[1,64], index: 4, kind: input, shape index: {}]
  %s5 = inlined_call_operand.<no memory space> [shape: f32[1,1], index: 5, kind: input, shape index: {}]
  %s6 = inlined_call_operand.vmem [shape: f32[16,1], index: 6, kind: output, shape index: {}]
  %s7 = sld [smem:[#allocation0]]
  $region61: #{tpu_custom_call.1} parent=0
    _
  %s9 = ssub.s32 1, %s7
  %s10 = scalar_select 0, %s9, %s7
  %11 = sst [smem:[#allocation2]] %s5
  $region1: #{tpu_custom_call.1} parent=0
    #allocation3 [shape = 'u8[4096]{0}', space=vmem, size = 0x1000, scoped, tag = 'input window, operand 0']
    #allocation4 [shape = 's32[2]{0}', space=sflag, size = 0x8, scoped, tag = 'scoped memory for tpu_custom_call.1']
    %12 = vsyncpa [#allocation4], 0
    %s13 = scalar_lea.sflag [#allocation4], 1
    %14 = vsyncpa %s13, 0
    loop: start=0, step=1, limit=4
    $region2: #{tpu_custom_call.1} parent=1 // loop_pre_header
      _
    $region3: #{tpu_custom_call.1} parent=1 // loop_header
      %s16 = sphi 0, %s20
      %p17 = scmp.ge.s32.totalorder %s16, 4
      %s26 = sphi 0, %s28
      %s29 = sphi 0, %s26
      %s30 = sphi 0, %s29
      %s46 = sphi 0, %s30
      %s52 = sphi 0, %s54
      %s55 = sphi 0, %s52
      %s56 = sphi 0, %s55
      %s72 = sphi 0, %s56
      %s76 = sphi 0, %s76
      %s78 = sphi 0, %s76
      %s79 = sphi 0, %s78
      %s93 = sphi 0, %s79
      %s97 = sphi 0, %s97
      %s99 = sphi 0, %s97
      %s100 = sphi 0, %s99
      %s114 = sphi 0, %s100
      %s118 = sphi 0, %s118
      %s120 = sphi 0, %s118
      %s121 = sphi 0, %s120
      %s135 = sphi 0, %s121
      %s139 = sphi 0, %s139
      %s141 = sphi 0, %s139
      %s142 = sphi 0, %s141
      %s156 = sphi 0, %s142
      %s162 = sphi 0, %s164
      %s165 = sphi 0, %s162
      %s166 = sphi 0, %s165
      %s182 = sphi 0, %s166
    $region4: #{tpu_custom_call.1} parent=1 // loop_header_branch
      %19 = sbr.rel (%p17) target = $region8
    $region5: #{tpu_custom_call.1} parent=1 // loop_body
      %s21 = ssub.s32 %s16, 1
      %s22 = ssub.s32 %s16, 2
      %s23 = sadd.s32 %s16, 1
      %s24 = ssub.s32 %s16, %s23
      %p25 = scmp.eq.s32.totalorder %s24, 0
      %s27 = sadd.s32 %s26, 1
      %s28 = scalar_select %p25, %s26, %s27
      %p31 = pneg %p25
      %p32 = scmp.eq.s32.totalorder %s16, 1
      %p33 = por %p31, %p32
      %p34 = scmp.ne.s32.totalorder %s26, %s29
      %p35 = scmp.eq.s32.totalorder %s16, 0
      %p36 = por %p34, %p35
      %p37 = scmp.ne.s32.totalorder %s26, %s29
      %p38 = scmp.eq.s32.totalorder %s21, 1
      %p39 = por %p37, %p38
      %p40 = scmp.ne.s32.totalorder %s29, %s30
      %p41 = scmp.eq.s32.totalorder %s21, 0
      %p42 = por %p40, %p41
      %p43 = scmp.ne.s32.totalorder %s29, %s30
      %p44 = scmp.eq.s32.totalorder %s22, 1
      %p45 = por %p43, %p44
      %p47 = scmp.ne.s32.totalorder %s30, %s46
      %p48 = scmp.eq.s32.totalorder %s22, 0
      %p49 = por %p47, %p48
      %s50 = ssub.s32 %s16, %s23
      %p51 = scmp.eq.s32.totalorder %s50, 0
      %s53 = sadd.s32 %s52, 1
      %s54 = scalar_select %p51, %s52, %s53
      %p57 = pneg %p51
      %p58 = scmp.eq.s32.totalorder %s16, 1
      %p59 = por %p57, %p58
      %p60 = scmp.ne.s32.totalorder %s52, %s55
      %p61 = scmp.eq.s32.totalorder %s16, 0
      %p62 = por %p60, %p61
      %p63 = scmp.ne.s32.totalorder %s52, %s55
      %p64 = scmp.eq.s32.totalorder %s21, 1
      %p65 = por %p63, %p64
      %p66 = scmp.ne.s32.totalorder %s55, %s56
      %p67 = scmp.eq.s32.totalorder %s21, 0
      %p68 = por %p66, %p67
      %p69 = scmp.ne.s32.totalorder %s55, %s56
      %p70 = scmp.eq.s32.totalorder %s22, 1
      %p71 = por %p69, %p70
      %p73 = scmp.ne.s32.totalorder %s56, %s72
      %p74 = scmp.eq.s32.totalorder %s22, 0
      %p75 = por %p73, %p74
      %s77 = sadd.s32 %s76, 1
      %p80 = scmp.eq.s32.totalorder %s16, 1
      %p81 = scmp.ne.s32.totalorder %s76, %s78
      %p82 = scmp.eq.s32.totalorder %s16, 0
      %p83 = por %p81, %p82
      %p84 = scmp.ne.s32.totalorder %s76, %s78
      %p85 = scmp.eq.s32.totalorder %s21, 1
      %p86 = por %p84, %p85
      %p87 = scmp.ne.s32.totalorder %s78, %s79
      %p88 = scmp.eq.s32.totalorder %s21, 0
      %p89 = por %p87, %p88
      %p90 = scmp.ne.s32.totalorder %s78, %s79
      %p91 = scmp.eq.s32.totalorder %s22, 1
      %p92 = por %p90, %p91
      %p94 = scmp.ne.s32.totalorder %s79, %s93
      %p95 = scmp.eq.s32.totalorder %s22, 0
      %p96 = por %p94, %p95
      %s98 = sadd.s32 %s97, 1
      %p101 = scmp.eq.s32.totalorder %s16, 1
      %p102 = scmp.ne.s32.totalorder %s97, %s99
      %p103 = scmp.eq.s32.totalorder %s16, 0
      %p104 = por %p102, %p103
      %p105 = scmp.ne.s32.totalorder %s97, %s99
      %p106 = scmp.eq.s32.totalorder %s21, 1
      %p107 = por %p105, %p106
      %p108 = scmp.ne.s32.totalorder %s99, %s100
      %p109 = scmp.eq.s32.totalorder %s21, 0
      %p110 = por %p108, %p109
      %p111 = scmp.ne.s32.totalorder %s99, %s100
      %p112 = scmp.eq.s32.totalorder %s22, 1
      %p113 = por %p111, %p112
      %p115 = scmp.ne.s32.totalorder %s100, %s114
      %p116 = scmp.eq.s32.totalorder %s22, 0
      %p117 = por %p115, %p116
      %s119 = sadd.s32 %s118, 1
      %p122 = scmp.eq.s32.totalorder %s16, 1
      %p123 = scmp.ne.s32.totalorder %s118, %s120
      %p124 = scmp.eq.s32.totalorder %s16, 0
      %p125 = por %p123, %p124
      %p126 = scmp.ne.s32.totalorder %s118, %s120
      %p127 = scmp.eq.s32.totalorder %s21, 1
      %p128 = por %p126, %p127
      %p129 = scmp.ne.s32.totalorder %s120, %s121
      %p130 = scmp.eq.s32.totalorder %s21, 0
      %p131 = por %p129, %p130
      %p132 = scmp.ne.s32.totalorder %s120, %s121
      %p133 = scmp.eq.s32.totalorder %s22, 1
      %p134 = por %p132, %p133
      %p136 = scmp.ne.s32.totalorder %s121, %s135
      %p137 = scmp.eq.s32.totalorder %s22, 0
      %p138 = por %p136, %p137
      %s140 = sadd.s32 %s139, 1
      %p143 = scmp.eq.s32.totalorder %s16, 1
      %p144 = scmp.ne.s32.totalorder %s139, %s141
      %p145 = scmp.eq.s32.totalorder %s16, 0
      %p146 = por %p144, %p145
      %p147 = scmp.ne.s32.totalorder %s139, %s141
      %p148 = scmp.eq.s32.totalorder %s21, 1
      %p149 = por %p147, %p148
      %p150 = scmp.ne.s32.totalorder %s141, %s142
      %p151 = scmp.eq.s32.totalorder %s21, 0
      %p152 = por %p150, %p151
      %p153 = scmp.ne.s32.totalorder %s141, %s142
      %p154 = scmp.eq.s32.totalorder %s22, 1
      %p155 = por %p153, %p154
      %p157 = scmp.ne.s32.totalorder %s142, %s156
      %p158 = scmp.eq.s32.totalorder %s22, 0
      %p159 = por %p157, %p158
      %s160 = ssub.s32 %s16, %s23
      %p161 = scmp.eq.s32.totalorder %s160, 0
      %s163 = sadd.s32 %s162, 1
      %s164 = scalar_select %p161, %s162, %s163
      %p167 = pneg %p161
      %p168 = scmp.eq.s32.totalorder %s16, 1
      %p169 = por %p167, %p168
      %p170 = scmp.ne.s32.totalorder %s162, %s165
      %p171 = scmp.eq.s32.totalorder %s16, 0
      %p172 = por %p170, %p171
      %p173 = scmp.ne.s32.totalorder %s162, %s165
      %p174 = scmp.eq.s32.totalorder %s21, 1
      %p175 = por %p173, %p174
      %p176 = scmp.ne.s32.totalorder %s165, %s166
      %p177 = scmp.eq.s32.totalorder %s21, 0
      %p178 = por %p176, %p177
      %p179 = scmp.ne.s32.totalorder %s165, %s166
      %p180 = scmp.eq.s32.totalorder %s22, 1
      %p181 = por %p179, %p180
      %p183 = scmp.ne.s32.totalorder %s166, %s182
      %p184 = scmp.eq.s32.totalorder %s22, 0
      %p185 = por %p183, %p184
      %p186 = scmp.le.s32.totalorder 1, %s16
      %p187 = scmp.lt.s32.totalorder %s16, 3
      %p188 = pnand %p186, %p187
      %p189 = pneg %p188
      // Predicated region
      $region9: #{tpu_custom_call.1} parent=5 // pred_check
        _
      $region10: #{tpu_custom_call.1} parent=5 // pred_check_branch
        %191 = sbr.rel (%p188) target = $region12
      $region11: #{tpu_custom_call.1} parent=5 // pred_region
        %s192 = ssub.s32 %s16, 1
        // Predicated region
        $region13: #{tpu_custom_call.1} parent=11 // pred_check
          %p193 = pneg %p89
        $region14: #{tpu_custom_call.1} parent=11 // pred_check_branch
          %195 = sbr.rel (%p193) target = $region16
        $region15: #{tpu_custom_call.1} parent=11 // pred_region
          _
        $region16: #{tpu_custom_call.1} parent=11 // pred_fallthru
          _
        // Predicated region
        $region17: #{tpu_custom_call.1} parent=11 // pred_check
          %p196 = pneg %p110
        $region18: #{tpu_custom_call.1} parent=11 // pred_check_branch
          %198 = sbr.rel (%p196) target = $region20
        $region19: #{tpu_custom_call.1} parent=11 // pred_region
          _
        $region20: #{tpu_custom_call.1} parent=11 // pred_fallthru
          _
        // Predicated region
        $region21: #{tpu_custom_call.1} parent=11 // pred_check
          %p199 = pneg %p131
        $region22: #{tpu_custom_call.1} parent=11 // pred_check_branch
          %201 = sbr.rel (%p199) target = $region24
        $region23: #{tpu_custom_call.1} parent=11 // pred_region
          _
        $region24: #{tpu_custom_call.1} parent=11 // pred_fallthru
          _
        // Predicated region
        $region25: #{tpu_custom_call.1} parent=11 // pred_check
          %p202 = pneg %p152
        $region26: #{tpu_custom_call.1} parent=11 // pred_check_branch
          %204 = sbr.rel (%p202) target = $region28
        $region27: #{tpu_custom_call.1} parent=11 // pred_region
          _
        $region28: #{tpu_custom_call.1} parent=11 // pred_fallthru
          _
      $region12: #{tpu_custom_call.1} parent=5 // pred_fallthru
        _
      %p205 = scmp.lt.s32.totalorder %s16, 2
      // Predicated region
      $region29: #{tpu_custom_call.1} parent=5 // pred_check
        %p206 = pneg %p205
      $region30: #{tpu_custom_call.1} parent=5 // pred_check_branch
        %208 = sbr.rel (%p206) target = $region32
      $region31: #{tpu_custom_call.1} parent=5 // pred_region
        // Predicated region
        $region33: #{tpu_custom_call.1} parent=31 // pred_check
          %p209 = pneg %p36
        $region34: #{tpu_custom_call.1} parent=31 // pred_check_branch
          %211 = sbr.rel (%p209) target = $region36
        $region35: #{tpu_custom_call.1} parent=31 // pred_region
          %s212 = sand.u32 %s26, 1
          %s213 = scalar_lea.sflag [#allocation4], %s212
          %s214 = sand.u32 %s26, 1
          %s215 = smul.addr %s214, 4
          %s216 = scalar_lea.vmem [#allocation3], %s215
          %s218 = ssub.s32 64, 64
          %219 = vsyncadd %s213, %s218
          %s220 = smul.addr %s16, 64
          %s221 = scalar_lea.hbm %s0, %s220
          %s223 = sshll.u32 %s216, 4
          %s224 = int_to_ptr.vmem [resolvable:$true] %s223
          %226 = dma.hbm_to_vmem [thread:$0]  %s221, 64, %s224, %s213
        $region36: #{tpu_custom_call.1} parent=31 // pred_fallthru
          _
        // Predicated region
        $region37: #{tpu_custom_call.1} parent=31 // pred_check
          %p227 = pneg %p62
        $region38: #{tpu_custom_call.1} parent=31 // pred_check_branch
          %229 = sbr.rel (%p227) target = $region40
        $region39: #{tpu_custom_call.1} parent=31 // pred_region
          %p230 = scmp.lt.s32.totalorder %s16, 1
          %s231 = scalar_select %p230, %s16, 1
          %s232 = smul.addr %s231, 4
          %s233 = scalar_lea.vmem %s1, %s232
        $region40: #{tpu_custom_call.1} parent=31 // pred_fallthru
          _
      $region32: #{tpu_custom_call.1} parent=5 // pred_fallthru
        _
      %p234 = scmp.le.s32.totalorder 1, %s16
      %p235 = scmp.lt.s32.totalorder %s16, 3
      %p236 = pnand %p234, %p235
      %p237 = pneg %p236
      // Predicated region
      $region41: #{tpu_custom_call.1} parent=5 // pred_check
        _
      $region42: #{tpu_custom_call.1} parent=5 // pred_check_branch
        %239 = sbr.rel (%p236) target = $region44
      $region43: #{tpu_custom_call.1} parent=5 // pred_region
        %s240 = ssub.s32 %s16, 1
        %s241 = sand.u32 %s29, 1
        %s242 = scalar_lea.sflag [#allocation4], %s241
        %s243 = sand.u32 %s29, 1
        %s244 = smul.addr %s243, 4
        %s245 = scalar_lea.vmem [#allocation3], %s244
        // Predicated region
        $region45: #{tpu_custom_call.1} parent=43 // pred_check
          %p246 = pneg %p42
        $region46: #{tpu_custom_call.1} parent=43 // pred_check_branch
          %248 = sbr.rel (%p246) target = $region48
        $region47: #{tpu_custom_call.1} parent=43 // pred_region
          %249 = dma.done %s242, 64
        $region48: #{tpu_custom_call.1} parent=43 // pred_fallthru
          _
        %s250 = sand.u32 %s29, 1
        %s251 = scalar_lea.sflag [#allocation4], %s250
        %s252 = sand.u32 %s29, 1
        %s253 = smul.addr %s252, 4
        %s254 = scalar_lea.vmem [#allocation3], %s253
        %p255 = pneg %p42
        %p256 = pneg %p39
        %p257 = scmp.lt.s32.totalorder %s21, 1
        %s258 = scalar_select %p257, %s21, 1
        %s259 = smul.addr %s258, 4
        %s260 = scalar_lea.vmem %s1, %s259
        %p261 = pneg %p68
        %p262 = pneg %p65
        %p263 = pneg %p89
        %p264 = pneg %p86
        %p265 = pneg %p110
        %p266 = pneg %p107
        %p267 = pneg %p131
        %p268 = pneg %p128
        %p269 = pneg %p152
        %p270 = pneg %p149
        %p271 = pneg %p178
        %p272 = pneg %p175
        %p273 = scmp.lt.s32.totalorder %s21, 1
        %s274 = scalar_select %p273, %s21, 1
        %s275 = smul.addr %s274, 8
        %s276 = scalar_lea.vmem %s6, %s275
        %p277 = scmp.lt.s32.totalorder %s21, 1
        %s278 = scalar_select %p277, %s21, 1
        %s279 = smul.addr %s278, 4
        %s280 = scalar_lea.vmem %s1, %s279
        %p281 = scmp.lt.s32.totalorder %s21, 1
        %s282 = scalar_select %p281, %s21, 1
        %s283 = smul.addr %s282, 8
        %s284 = scalar_lea.vmem %s6, %s283
        %v286 = vld [vmem:[%s245] sm:$0xf]
        %v287 = vld [vmem:[%s280] sm:$0xf]
        %289 = vset.pattern.permute.xlu0 0
        %290 = vperm.xlu0 %289, %v287
        %v291 = vpop.permute.xlu0 %290
        %v294 = vunpack.c.l.s4 839922192
        %v295 = vunpack.c.0.s8 %v294
        %v296 = vlaneseq
        %v297 = vshrl.u32 %v296, 7
        %v298 = vsub.s32 %v295, %v297
        %v299 = vrot.slane %v291, %v298
        %v300 = vmul.bf16 %v286, %v299
        %v301 = vld [vmem:[%s2] sm:$0xf]
        %v302 = vld [vmem:[%s2 + $0x4] sm:$0xf]
        %v303 = vld [vmem:[%s2 + $0x8] sm:$0xf]
        %v304 = vld [vmem:[%s2 + $0xc] sm:$0xf]
        %v305 = vld [vmem:[%s3] sm:$0x1]
        %v307 = vlaneseq
        %v308 = vshrl.u32 %v307, 7
        %v309 = vsub.s32 0, %v308
        %v310 = vrot.slane %v305, %v309
        %v316 = vunpack.c.l.b16 %v301
        %v317 = vunpack.c.l.b16 %v302
        %v318 = vunpack.c.l.b16 %v303
        %v319 = vunpack.c.l.b16 %v304
        %v320 = vpack.c.b16 %v317, %v316
        %v321 = vpack.c.b16 %v319, %v318
        %vm324 = vcmask 261120
        %v326 = vsel %vm324, %v300, 0
        %328 = vmatprep.subr.bf16.mxu0 0
        %329 = vmatpush1.bf16.msra.mxu0 %v320
        %330 = vmatprep.subr.bf16.mxu0 0
        %331 = vmatpush1.bf16.msra.mxu0 %v321
        %332 = vmatprep.subr.bf16.mxu0 0
        %333 = vmatpush1.bf16.msra.mxu0 0
        %334 = vmatprep.subr.bf16.mxu0 0
        %335 = vmatpush1.bf16.msra.mxu0 0
        %336 = vmatprep.subr.bf16.mxu0 0
        %337 = vmatpush1.bf16.msra.mxu0 0
        %338 = vmatprep.subr.bf16.mxu0 0
        %339 = vmatpush1.bf16.msra.mxu0 0
        %340 = vmatprep.subr.bf16.mxu0 0
        %341 = vmatpush1.bf16.msra.mxu0 0
        %342 = vmatprep.subr.bf16.mxu0 0
        %343 = vmatpush1.bf16.msra.mxu0 0
        %344 = vmatprep.subr.bf16.mxu0 0
        %345 = vmatpush1.bf16.msra.mxu0 0
        %346 = vmatprep.subr.bf16.mxu0 0
        %347 = vmatpush1.bf16.msra.mxu0 0
        %348 = vmatprep.subr.bf16.mxu0 0
        %349 = vmatpush1.bf16.msra.mxu0 0
        %350 = vmatprep.subr.bf16.mxu0 0
        %351 = vmatpush1.bf16.msra.mxu0 0
        %352 = vmatprep.subr.bf16.mxu0 0
        %353 = vmatpush1.bf16.msra.mxu0 0
        %354 = vmatprep.subr.bf16.mxu0 0
        %355 = vmatpush1.bf16.msra.mxu0 0
        %356 = vmatprep.subr.bf16.mxu0 0
        %357 = vmatpush1.bf16.msra.mxu0 0
        %358 = vmatprep.subr.bf16.mxu0 0
        %359 = vmatpush1.bf16.msra.mxu0 0
        %360 = vmatprep.mubr.bf16.mxu0 0
        %361 = vmatmul.mubr.bf16.gmra.mrb[0].mxu0 %v326
        %v362 = vpop.f32.mrb[0].mxu0
        %v363 = vadd.f32 %v310, %v362
        %v364 = vpop.f32.mrb[0].mxu0
        %v365 = vpop.f32.mrb[0].mxu0
        %v366 = vpop.f32.mrb[0].mxu0
        %367 = vdwg.mxu0
        %v368 = vmax.f32 %v363, 0.0
        %v369 = vld [vmem:[%s4] sm:$0x1]
        %v371 = vlaneseq
        %v372 = vshrl.u32 %v371, 7
        %v373 = vsub.s32 0, %v372
        %v374 = vrot.slane %v369, %v373
        %v376 = vmul.f32 %v368, %v374
        %vm377 = vcmask 523264
        %v378 = vsel %vm377, %v376, 0.0
        %379 = vadd.xlane.f32.xlu0 %v378
        %v380 = vpop.xlane.xlu0 %379
        %s381 = sld [smem:[#allocation2]]
        %v382 = vstv %s381
        %v383 = vadd.f32 %v380, %v382
        %vm384 = vcmask 7168
        %385 = vst.msk [vmem:[%s284] sm:$0xff] %vm384, %v383
        %p386 = scmp.lt.s32.totalorder %s21, 1
        %s387 = scalar_select %p386, %s21, 1
        %s388 = smul.addr %s387, 8
        %s389 = scalar_lea.vmem %s6, %s388
        // Predicated region
        $region49: #{tpu_custom_call.1} parent=43 // pred_check
          %p390 = pneg %p175
        $region50: #{tpu_custom_call.1} parent=43 // pred_check_branch
          %392 = sbr.rel (%p390) target = $region52
        $region51: #{tpu_custom_call.1} parent=43 // pred_region
          _
        $region52: #{tpu_custom_call.1} parent=43 // pred_fallthru
          _
      $region44: #{tpu_custom_call.1} parent=5 // pred_fallthru
        _
      %p393 = scmp.le.s32.totalorder 2, %s16
      // Predicated region
      $region53: #{tpu_custom_call.1} parent=5 // pred_check
        %p394 = pneg %p393
      $region54: #{tpu_custom_call.1} parent=5 // pred_check_branch
        %396 = sbr.rel (%p394) target = $region56
      $region55: #{tpu_custom_call.1} parent=5 // pred_region
        %s397 = ssub.s32 %s16, 2
        // Predicated region
        $region57: #{tpu_custom_call.1} parent=55 // pred_check
          %p398 = pneg %p181
        $region58: #{tpu_custom_call.1} parent=55 // pred_check_branch
          %400 = sbr.rel (%p398) target = $region60
        $region59: #{tpu_custom_call.1} parent=55 // pred_region
          %p401 = scmp.lt.s32.totalorder %s22, 1
          %s402 = scalar_select %p401, %s22, 1
          %s403 = smul.addr %s402, 8
          %s404 = scalar_lea.vmem %s6, %s403
        $region60: #{tpu_custom_call.1} parent=55 // pred_fallthru
          _
      $region56: #{tpu_custom_call.1} parent=5 // pred_fallthru
        _
    $region6: #{tpu_custom_call.1} parent=1 // loop_footer
      %s20 = sadd.s32 1, %s16
    $region7: #{tpu_custom_call.1} parent=1 // loop_footer_branch
      %15 = sbr.rel target = $region3
    $region8: #{tpu_custom_call.1} parent=1 // loop_exit
      _
    %405 = vsyncpa [#allocation4], 1
    %s406 = scalar_lea.sflag [#allocation4], 1
    %407 = vsyncpa %s406, 1

</llo_original>
